<compile_context>
chip_gen: v7x
topology: tpu7x:2x2x1
jax: 0.10.0
libtpu: 0.0.40
codegen_flags: <defaults>
</compile_context>

<pallas_src>
import functools

import jax
import jax.numpy as jnp
from jax.experimental import pallas as pl
from jax.experimental.pallas import tpu as pltpu

_MIB = 1024 * 1024


# ----------------------------------------------------------------------------
# Helpers
# ----------------------------------------------------------------------------
def _vmem_limit_bytes():
    """Generation-aware scoped VMEM limit: ~3/4 of physical, capped at 100 MiB."""
    try:
        phys = int(pltpu.get_tpu_info().vmem_capacity_bytes)
    except Exception:
        phys = 64 * _MIB          # v7x-safe fallback
    return min(phys * 3 // 4, 100 * _MIB)


def _round_down_128(n):
    return max(128, (n // 128) * 128)


# ----------------------------------------------------------------------------
# Pallas kernels
# ----------------------------------------------------------------------------
def _reduce_kernel(x_ref, o_ref, *, method):
    # x_ref: (TBC, D, THW), o_ref: (TBC, THW)  -- reduce over the sublane dim D.
    x = x_ref[...]
    if method == "max":
        o_ref[...] = jnp.max(x, axis=1)
    else:  # "sum": accumulate in f32 (matters for bf16 inputs), cast back.
        o_ref[...] = jnp.sum(x.astype(jnp.float32), axis=1).astype(o_ref.dtype)


def _learned_single_kernel(x_ref, w_ref, b_ref, o_ref, *, precision,
                           compute_dtype):
    # Single K step: no scratch accumulator, no pl.when branches.
    # x_ref: (1, K, TN), w_ref: (Cout, K), b_ref: (Cout, 1), o_ref: (1, Cout, TN)
    x = x_ref[0]
    if compute_dtype is not None:
        x = x.astype(compute_dtype)        # per-tile cast, no extra HBM pass
    acc = jnp.dot(w_ref[...], x, preferred_element_type=jnp.float32,
                  precision=precision)
    o_ref[0] = (acc + b_ref[...]).astype(o_ref.dtype)


def _learned_acc_kernel(x_ref, w_ref, b_ref, o_ref, acc_ref, *, precision,
                        compute_dtype, k_total, tk, mask_k):
    # K-tiled fallback (large C*D): f32 VMEM accumulator, init/finalize via pl.when.
    # x_ref: (1, TK, TN), w_ref: (Cout, TK), b_ref: (Cout, 1)
    # o_ref: (1, Cout, TN), acc_ref: (Cout, TN) f32
    k = pl.program_id(2)

    @pl.when(k == 0)
    def _():
        acc_ref[...] = jnp.zeros_like(acc_ref)

    x = x_ref[0]
    if mask_k:
        # Last K block may read past K; zero those rows (W is zero-padded too).
        kidx = jax.lax.broadcasted_iota(jnp.int32, x.shape, 0) + k * tk
        x = jnp.where(kidx < k_total, x, jnp.zeros_like(x))
    if compute_dtype is not None:
        x = x.astype(compute_dtype)
    acc_ref[...] += jnp.dot(w_ref[...], x, preferred_element_type=jnp.float32,
                            precision=precision)

    @pl.when(k == pl.num_programs(2) - 1)
    def _():
        o_ref[0] = (acc_ref[...] + b_ref[...]).astype(o_ref.dtype)


# ----------------------------------------------------------------------------
# Wrappers
# ----------------------------------------------------------------------------
def bev_reduce(x, method):
    """x: (B, C, D, H, W) -> (B, C, H, W) via max/sum over D."""
    B, C, D, H, W = x.shape
    HW = H * W
    BC = B * C
    x2 = x.reshape(BC, D, HW)                      # free reshape
    itemsize = x.dtype.itemsize

    vmem_limit = _vmem_limit_bytes()
    in_budget = vmem_limit // 3                    # double-buffered input blocks

    # Lane tile: full extent when small, else a large multiple of 128.
    lane_cap = 2048
    thw = HW if HW <= 2 * lane_cap else lane_cap
    # Guard: even an 8-row double-buffered block must fit the budget.
    max_thw = _round_down_128(in_budget // (2 * 8 * D * itemsize))
    if thw > max_thw and HW > max_thw:
        thw = max_thw

    # Row tile: as many rows as the budget allows (multiple of 8), cap 1024.
    row_bytes = D * thw * itemsize
    tbc = max(8, in_budget // (2 * row_bytes))
    tbc = max(8, (tbc // 8) * 8)
    tbc = min(tbc, 1024)
    if BC <= tbc:
        tbc = BC                                   # full extent is always legal

    out = pl.pallas_call(
        functools.partial(_reduce_kernel, method=method),
        out_shape=jax.ShapeDtypeStruct((BC, HW), x.dtype),
        grid_spec=pltpu.PrefetchScalarGridSpec(
            num_scalar_prefetch=0,
            # HW-tile axis first: the larger parallel extent for v7x megacore.
            grid=(pl.cdiv(HW, thw), pl.cdiv(BC, tbc)),
            in_specs=[pl.BlockSpec((tbc, D, thw), lambda j, i: (i, 0, j))],
            out_specs=pl.BlockSpec((tbc, thw), lambda j, i: (i, j)),
        ),
        compiler_params=pltpu.CompilerParams(
            dimension_semantics=("parallel", "parallel"),
            vmem_limit_bytes=vmem_limit,
        ),
    )(x2)
    return out.reshape(B, C, H, W)


def bev_learned(x, weight, bias, *, compute_dtype=None, precision=None):
    """x: (B, C, D, H, W); weight: (Cout, Cin, D, 1, 1); bias: (Cout,).

    Equivalent to nn.Conv3d(C, C, kernel_size=(D,1,1)) followed by squeeze(2).
    """
    B, C, D, H, W = x.shape
    Cout, Cin, Dk, kh, kw = weight.shape
    assert Cin == C and kh == 1 and kw == 1, "unexpected conv weight shape"
    assert Dk == D, f"conv kernel depth {Dk} must equal input depth {D}"

    HW = H * W
    K = C * D
    itemsize = x.dtype.itemsize

    if precision is None:
        # f32 parity with PyTorch's Conv3d; memory-bound so extra MXU passes hide.
        precision = (jax.lax.Precision.DEFAULT if compute_dtype is not None
                     else jax.lax.Precision.HIGHEST)

    # Free reshapes -- no wrapper transposes and NO wrapper activation cast
    # (casting x here would add a full extra HBM pass; cast per-tile instead).
    x_mat = x.reshape(B, K, HW)                    # (B, C*D, HW)
    w_mat = weight.reshape(Cout, K)                # (Cout, C*D), tiny
    if compute_dtype is not None:
        w_mat = w_mat.astype(compute_dtype)
    b_mat = bias.reshape(Cout, 1)
    w_itemsize = w_mat.dtype.itemsize

    vmem_limit = _vmem_limit_bytes()
    x_budget = (vmem_limit * 11) // 20             # ~55% for double-buffered X blocks

    # Lane tile: as large as the budget allows with a SINGLE K step.
    max_tn = max(128, x_budget // (2 * K * itemsize))
    if HW <= max_tn:
        tn = HW                                    # full lane extent (always legal)
    else:
        tn = _round_down_128(min(max_tn, 2048))

    n_tiles = pl.cdiv(HW, tn)
    single_bytes = (2 * K * tn * itemsize          # x blocks (double-buffered)
                    + 2 * Cout * K * w_itemsize    # weight blocks
                    + 2 * Cout * tn * itemsize)    # output blocks
    single_step = single_bytes <= (vmem_limit * 9) // 10

    common_params = pltpu.CompilerParams(
        dimension_semantics=("parallel", "parallel", "arbitrary")[
            : (2 if single_step else 3)],
        vmem_limit_bytes=vmem_limit,
    )

    if single_step:
        # Weight index map is constant -> W is DMA'd once; no scratch, no pl.when.
        out = pl.pallas_call(
            functools.partial(_learned_single_kernel, precision=precision,
                              compute_dtype=compute_dtype),
            out_shape=jax.ShapeDtypeStruct((B, Cout, HW), x.dtype),
            grid_spec=pltpu.PrefetchScalarGridSpec(
                num_scalar_prefetch=0,
                # HW-tile axis first: the large parallel extent for v7x megacore.
                grid=(n_tiles, B),
                in_specs=[
                    pl.BlockSpec((1, K, tn), lambda n, b: (b, 0, n)),
                    pl.BlockSpec((Cout, K), lambda n, b: (0, 0)),
                    pl.BlockSpec((Cout, 1), lambda n, b: (0, 0)),
                ],
                out_specs=pl.BlockSpec((1, Cout, tn), lambda n, b: (b, 0, n)),
            ),
            compiler_params=common_params,
        )(x_mat, w_mat, b_mat)
    else:
        # K-tiled fallback for very large C*D (VMEM-guarded).
        max_tk = _round_down_128(x_budget // (2 * tn * itemsize))
        tk = None
        for cand in range(max_tk, 0, -128):        # prefer an exact divisor of K
            if K % cand == 0:
                tk = cand
                break
        if tk is not None:
            k_steps = K // tk
            mask_k = False
            w_in = w_mat
        else:
            tk = max_tk
            k_steps = -(-K // tk)
            mask_k = True
            # Zero-pad the (tiny) weight so its K blocks never read OOB; the
            # activation's OOB rows are masked to zero inside the kernel.
            w_in = jnp.pad(w_mat, ((0, 0), (0, k_steps * tk - K)))

        out = pl.pallas_call(
            functools.partial(_learned_acc_kernel, precision=precision,
                              compute_dtype=compute_dtype, k_total=K, tk=tk,
                              mask_k=mask_k),
            out_shape=jax.ShapeDtypeStruct((B, Cout, HW), x.dtype),
            grid_spec=pltpu.PrefetchScalarGridSpec(
                num_scalar_prefetch=0,
                grid=(n_tiles, B, k_steps),
                in_specs=[
                    pl.BlockSpec((1, tk, tn), lambda n, b, k: (b, k, n)),
                    pl.BlockSpec((Cout, tk), lambda n, b, k: (0, k)),
                    pl.BlockSpec((Cout, 1), lambda n, b, k: (0, 0)),
                ],
                out_specs=pl.BlockSpec((1, Cout, tn), lambda n, b, k: (b, 0, n)),
                scratch_shapes=[pltpu.VMEM((Cout, tn), jnp.float32)],
            ),
            compiler_params=common_params,
        )(x_mat, w_in, b_mat)

    return out.reshape(B, Cout, H, W)              # free reshape


class BEVConverter:
    def __init__(self, input_channels, bev_method="max", key=None):
        self.bev_method = bev_method
        self.input_channels = input_channels
        if bev_method == "learned":
            # Deterministic synthetic Conv3d(C, C, (40,1,1)) params (PyTorch init).
            if key is None:
                key = jax.random.PRNGKey(0)
            kw, kb = jax.random.split(key)
            D_kernel = 40
            fan_in = input_channels * D_kernel
            bound = 1.0 / jnp.sqrt(fan_in)
            self.weight = jax.random.uniform(
                kw, (input_channels, input_channels, D_kernel, 1, 1),
                dtype=jnp.float32, minval=-bound, maxval=bound)
            self.bias = jax.random.uniform(
                kb, (input_channels,), dtype=jnp.float32,
                minval=-bound, maxval=bound)

    def __call__(self, x):
        if self.bev_method in ("max", "sum"):
            return bev_reduce(x, self.bev_method)
        elif self.bev_method == "learned":
            return bev_learned(x, self.weight, self.bias)
        else:
            raise ValueError(f"Unknown BEV method: {self.bev_method}")


# ----------------------------------------------------------------------------
# Demo / self-check
# ----------------------------------------------------------------------------
if __name__ == "__main__":
    key = jax.random.PRNGKey(0)
    kx1, kx2, kp = jax.random.split(key, 3)

    B, C, H, W = 2, 4, 16, 16

    # --- max / sum paths (small depth) ---
    D = 8
    x = jax.random.normal(kx1, (B, C, D, H, W), dtype=jnp.float32)

    out_max = jax.block_until_ready(BEVConverter(C, "max")(x))
    out_sum = jax.block_until_ready(BEVConverter(C, "sum")(x))
    assert out_max.shape == (B, C, H, W)
    assert out_sum.shape == (B, C, H, W)
    assert jnp.allclose(out_max, jnp.max(x, axis=2), atol=1e-5)
    assert jnp.allclose(out_sum, jnp.sum(x, axis=2), atol=1e-4)

    # --- learned path (depth 40 matches the (40,1,1) conv kernel) ---
    D_learned = 40
    xl = jax.random.normal(kx2, (B, C, D_learned, H, W), dtype=jnp.float32)
    conv = BEVConverter(C, "learned", key=kp)
    out_learned = jax.block_until_ready(conv(xl))
    assert out_learned.shape == (B, C, H, W)

    # Pure-JAX reference for the learned conv (collapse depth), f32 precision.
    ref = (jnp.einsum("bcdhw,ocd->bohw",
                      xl, conv.weight.reshape(C, C, D_learned),
                      precision=jax.lax.Precision.HIGHEST)
           + conv.bias[None, :, None, None])
    assert jnp.allclose(out_learned, ref, atol=1e-4)

    print("KERNEL_OK")
</pallas_src>

<mosaic_0001>
module attributes {stable_mosaic.version = 11 : i64} {
  func.func @_reduce_kernel(%arg0: i32, %arg1: i32, %arg2: memref<8x8x256xf32, #tpu.memory_space<vmem>>, %arg3: memref<8x256xf32, #tpu.memory_space<vmem>>) attributes {dimension_semantics = [#tpu.dimension_semantics<parallel>, #tpu.dimension_semantics<parallel>], iteration_bounds = array<i64: 1, 1>, scalar_prefetch = 0 : i64, scratch_operands = 0 : i64, tpu.core_type = #tpu.core_type<tc>, window_params = [{transform_indices = @transform_0, window_bounds = array<i64: 8, 8, 256>}, {transform_indices = @transform_1, window_bounds = array<i64: 8, 256>}]} {
    %c0 = arith.constant 0 : index
    %c0_0 = arith.constant 0 : index
    %c0_1 = arith.constant 0 : index
    %0 = vector.load %arg2[%c0, %c0_0, %c0_1] : memref<8x8x256xf32, #tpu.memory_space<vmem>>, vector<8x8x256xf32>
    %cst = arith.constant dense<0xFF800000> : vector<8x256xf32>
    %1 = vector.multi_reduction <maximumf>, %0, %cst [1] : vector<8x8x256xf32> to vector<8x256xf32>
    %c0_2 = arith.constant 0 : index
    %c0_3 = arith.constant 0 : index
    %2 = vector.load %arg3[%c0_2, %c0_3] : memref<8x256xf32, #tpu.memory_space<vmem>>, vector<8x256xf32>
    tpu.vector_store %arg3[%c0_2, %c0_3], %1 {strides = array<i32>} : memref<8x256xf32, #tpu.memory_space<vmem>>, vector<8x256xf32>,
    return
  }
  func.func @transform_0(%arg0: i32, %arg1: i32) -> (i32, i32, i32) {
    %c0_i32 = arith.constant 0 : i32
    %c0_i32_0 = arith.constant 0 : i32
    return %arg1, %c0_i32, %arg0 : i32, i32, i32
  }
  func.func @transform_1(%arg0: i32, %arg1: i32) -> (i32, i32) {
    %c0_i32 = arith.constant 0 : i32
    return %arg1, %arg0 : i32, i32
  }
}

</mosaic_0001>

<llo_original>
// kernel: tpu_custom_call.1
$region0: #{tpu_custom_call.1}
  #allocation0 [shape = 'u32[]', space=smem, size = 0x4, offset = 0x4, fixed_abs, tag = 'smem constant byte address 0x4 - core index']
  #allocation1 [shape = 'u32[144,128]{1,0:T(1,128)}', space=vmem, size = 0x12000, scoped, tag = 'internal scratch']
  %s0 = inlined_call_operand.hbm [shape: f32[8,8,256], index: 0, kind: input, shape index: {}]
  %s1 = inlined_call_operand.hbm [shape: f32[8,256], index: 1, kind: output, shape index: {}]
  %s2 = sld [smem:[#allocation0]]
  $region18: #{tpu_custom_call.1} parent=0
    _
  %s4 = ssub.s32 1, %s2
  %s5 = scalar_select 0, %s4, %s2
  $region1: #{tpu_custom_call.1} parent=0
    #allocation2 [shape = 'u8[65536]{0}', space=vmem, size = 0x10000, scoped, tag = 'input window, operand 0, single buffered']
    #allocation3 [shape = 's32[1]{0}', space=sflag, size = 0x4, scoped, tag = 'scoped memory for tpu_custom_call.1']
    #allocation4 [shape = 's32[1]{0}', space=sflag, size = 0x4, scoped, tag = 'scoped memory for tpu_custom_call.1']
    #allocation5 [shape = 'u8[8192]{0}', space=vmem, size = 0x2000, scoped, tag = 'output window, operand 0, single buffered']
    %6 = vsyncpa [#allocation3], 0
    %7 = vsyncpa [#allocation4], 0
    // Predicated region
    $region2: #{tpu_custom_call.1} parent=1 // pred_check
      _
    $region3: #{tpu_custom_call.1} parent=1 // pred_check_branch
      %9 = sbr.rel (0) target = $region5
    $region4: #{tpu_custom_call.1} parent=1 // pred_region
      %s11 = ssub.s32 2048, 2048
      %12 = vsyncadd [#allocation3], %s11
      %s13 = sshll.u32 [#allocation2], 4
      %s14 = int_to_ptr.vmem [resolvable:$true] %s13
      %19 = dma.hbm_to_vmem [thread:$0]  %s0, 2048, %s14, [#allocation3], 256, 256, 16
    $region5: #{tpu_custom_call.1} parent=1 // pred_fallthru
      _
    // Predicated region
    $region6: #{tpu_custom_call.1} parent=1 // pred_check
      _
    $region7: #{tpu_custom_call.1} parent=1 // pred_check_branch
      %21 = sbr.rel (0) target = $region9
    $region8: #{tpu_custom_call.1} parent=1 // pred_region
      %22 = dma.done [#allocation3], 2048
    $region9: #{tpu_custom_call.1} parent=1 // pred_fallthru
      _
    %v23 = vld [vmem:[#allocation2] sm:$0xff]
    %v24 = vld [vmem:[#allocation2 + $0x8] sm:$0xff]
    %v25 = vld [vmem:[#allocation2 + $0x10] sm:$0xff]
    %v26 = vld [vmem:[#allocation2 + $0x18] sm:$0xff]
    %v27 = vld [vmem:[#allocation2 + $0x20] sm:$0xff]
    %v28 = vld [vmem:[#allocation2 + $0x28] sm:$0xff]
    %v29 = vld [vmem:[#allocation2 + $0x30] sm:$0xff]
    %v30 = vld [vmem:[#allocation2 + $0x38] sm:$0xff]
    %v31 = vld [vmem:[#allocation2 + $0x40] sm:$0xff]
    %v32 = vld [vmem:[#allocation2 + $0x48] sm:$0xff]
    %v33 = vld [vmem:[#allocation2 + $0x50] sm:$0xff]
    %v34 = vld [vmem:[#allocation2 + $0x58] sm:$0xff]
    %v35 = vld [vmem:[#allocation2 + $0x60] sm:$0xff]
    %v36 = vld [vmem:[#allocation2 + $0x68] sm:$0xff]
    %v37 = vld [vmem:[#allocation2 + $0x70] sm:$0xff]
    %v38 = vld [vmem:[#allocation2 + $0x78] sm:$0xff]
    %v39 = vrot.slane %v23, 4
    %v40 = vmax.f32 %v23, %v39
    %v41 = vrot.slane %v40, 2
    %v42 = vmax.f32 %v40, %v41
    %v43 = vrot.slane %v42, 1
    %v44 = vmax.f32 %v42, %v43
    %v45 = vrot.slane %v24, 4
    %v46 = vmax.f32 %v24, %v45
    %v47 = vrot.slane %v46, 2
    %v48 = vmax.f32 %v46, %v47
    %v49 = vrot.slane %v48, 1
    %v50 = vmax.f32 %v48, %v49
    %v51 = vrot.slane %v25, 4
    %v52 = vmax.f32 %v25, %v51
    %v53 = vrot.slane %v52, 2
    %v54 = vmax.f32 %v52, %v53
    %v55 = vrot.slane %v54, 1
    %v56 = vmax.f32 %v54, %v55
    %v57 = vrot.slane %v26, 4
    %v58 = vmax.f32 %v26, %v57
    %v59 = vrot.slane %v58, 2
    %v60 = vmax.f32 %v58, %v59
    %v61 = vrot.slane %v60, 1
    %v62 = vmax.f32 %v60, %v61
    %v63 = vrot.slane %v27, 4
    %v64 = vmax.f32 %v27, %v63
    %v65 = vrot.slane %v64, 2
    %v66 = vmax.f32 %v64, %v65
    %v67 = vrot.slane %v66, 1
    %v68 = vmax.f32 %v66, %v67
    %v69 = vrot.slane %v28, 4
    %v70 = vmax.f32 %v28, %v69
    %v71 = vrot.slane %v70, 2
    %v72 = vmax.f32 %v70, %v71
    %v73 = vrot.slane %v72, 1
    %v74 = vmax.f32 %v72, %v73
    %v75 = vrot.slane %v29, 4
    %v76 = vmax.f32 %v29, %v75
    %v77 = vrot.slane %v76, 2
    %v78 = vmax.f32 %v76, %v77
    %v79 = vrot.slane %v78, 1
    %v80 = vmax.f32 %v78, %v79
    %v81 = vrot.slane %v30, 4
    %v82 = vmax.f32 %v30, %v81
    %v83 = vrot.slane %v82, 2
    %v84 = vmax.f32 %v82, %v83
    %v85 = vrot.slane %v84, 1
    %v86 = vmax.f32 %v84, %v85
    %v87 = vrot.slane %v31, 4
    %v88 = vmax.f32 %v31, %v87
    %v89 = vrot.slane %v88, 2
    %v90 = vmax.f32 %v88, %v89
    %v91 = vrot.slane %v90, 1
    %v92 = vmax.f32 %v90, %v91
    %v93 = vrot.slane %v32, 4
    %v94 = vmax.f32 %v32, %v93
    %v95 = vrot.slane %v94, 2
    %v96 = vmax.f32 %v94, %v95
    %v97 = vrot.slane %v96, 1
    %v98 = vmax.f32 %v96, %v97
    %v99 = vrot.slane %v33, 4
    %v100 = vmax.f32 %v33, %v99
    %v101 = vrot.slane %v100, 2
    %v102 = vmax.f32 %v100, %v101
    %v103 = vrot.slane %v102, 1
    %v104 = vmax.f32 %v102, %v103
    %v105 = vrot.slane %v34, 4
    %v106 = vmax.f32 %v34, %v105
    %v107 = vrot.slane %v106, 2
    %v108 = vmax.f32 %v106, %v107
    %v109 = vrot.slane %v108, 1
    %v110 = vmax.f32 %v108, %v109
    %v111 = vrot.slane %v35, 4
    %v112 = vmax.f32 %v35, %v111
    %v113 = vrot.slane %v112, 2
    %v114 = vmax.f32 %v112, %v113
    %v115 = vrot.slane %v114, 1
    %v116 = vmax.f32 %v114, %v115
    %v117 = vrot.slane %v36, 4
    %v118 = vmax.f32 %v36, %v117
    %v119 = vrot.slane %v118, 2
    %v120 = vmax.f32 %v118, %v119
    %v121 = vrot.slane %v120, 1
    %v122 = vmax.f32 %v120, %v121
    %v123 = vrot.slane %v37, 4
    %v124 = vmax.f32 %v37, %v123
    %v125 = vrot.slane %v124, 2
    %v126 = vmax.f32 %v124, %v125
    %v127 = vrot.slane %v126, 1
    %v128 = vmax.f32 %v126, %v127
    %v129 = vrot.slane %v38, 4
    %v130 = vmax.f32 %v38, %v129
    %v131 = vrot.slane %v130, 2
    %v132 = vmax.f32 %v130, %v131
    %v133 = vrot.slane %v132, 1
    %v134 = vmax.f32 %v132, %v133
    %vm151 = vcmask 1041409
    %v152 = vsel %vm151, %v56, %v44
    %vm153 = vcmask 1042434
    %v154 = vsel %vm153, %v68, %v152
    %vm155 = vcmask 1043459
    %v156 = vsel %vm155, %v80, %v154
    %vm157 = vcmask 1044484
    %v158 = vsel %vm157, %v92, %v156
    %vm159 = vcmask 1045509
    %v160 = vsel %vm159, %v104, %v158
    %vm161 = vcmask 1046534
    %v162 = vsel %vm161, %v116, %v160
    %vm163 = vcmask 1047559
    %v164 = vsel %vm163, %v128, %v162
    %v165 = vsel %vm151, %v62, %v50
    %v166 = vsel %vm153, %v74, %v165
    %v167 = vsel %vm155, %v86, %v166
    %v168 = vsel %vm157, %v98, %v167
    %v169 = vsel %vm159, %v110, %v168
    %v170 = vsel %vm161, %v122, %v169
    %v171 = vsel %vm163, %v134, %v170
    %174 = vst [vmem:[#allocation5] sm:$0xff] %v164
    %175 = vst [vmem:[#allocation5 + $0x8] sm:$0xff] %v171
    // Predicated region
    $region10: #{tpu_custom_call.1} parent=1 // pred_check
      _
    $region11: #{tpu_custom_call.1} parent=1 // pred_check_branch
      %177 = sbr.rel (0) target = $region13
    $region12: #{tpu_custom_call.1} parent=1 // pred_region
      %s179 = ssub.s32 256, 256
      %180 = vsyncadd [#allocation4], %s179
      %s182 = sshll.u32 [#allocation5], 4
      %s183 = int_to_ptr.vmem [resolvable:$true] %s182
      %185 = dma.vmem_to_hbm [thread:$0]  %s183, 256, %s1, [#allocation4]
    $region13: #{tpu_custom_call.1} parent=1 // pred_fallthru
      _
    // Predicated region
    $region14: #{tpu_custom_call.1} parent=1 // pred_check
      _
    $region15: #{tpu_custom_call.1} parent=1 // pred_check_branch
      %187 = sbr.rel (0) target = $region17
    $region16: #{tpu_custom_call.1} parent=1 // pred_region
      %188 = dma.done [#allocation4], 256
    $region17: #{tpu_custom_call.1} parent=1 // pred_fallthru
      _
    %189 = vsyncpa [#allocation3], 1
    %190 = vsyncpa [#allocation4], 1

</llo_original>
